<compile_context>
chip_gen: v7x
topology: tpu7x:2x2x1
jax: 0.10.0
libtpu: 0.0.40
codegen_flags: <defaults>
</compile_context>

<pallas_src>
import functools

import jax
import jax.numpy as jnp
from jax.experimental import pallas as pl
from jax.experimental.pallas import tpu as pltpu

PAD = 128          # every layer width (hidden / lidar_feature / action) -> one lane tile
SEG_ALIGN = 16     # slab segment row alignment (bf16 packs 16 rows per sublane tile)


def _round_up(x, m):
    return (x + m - 1) // m * m


# --------------------------------------------------------------------------
# Kernel
# --------------------------------------------------------------------------
def _actor_kernel(max_action, layout, lidar_ref, pos_ref, p_ref, out_ref):
    f32 = jnp.float32
    cd = p_ref.dtype                      # matmul-input dtype (bf16 or f32)

    def P(name):
        off, k = layout[name]             # static python ints -> static slice
        return p_ref[off:off + k, :]

    def dense(x, w, b):
        return (jnp.dot(x.astype(cd), P(w), preferred_element_type=f32)
                + P(b).astype(f32))

    x = lidar_ref[...]                    # (TB, L)
    pos = pos_ref[...]                    # (TB, P)

    # ---- lidar compress net (torch.no_grad() in the reference; inference only) ----
    h = jnp.maximum(dense(x, "cw1", "cb1"), 0.0)
    h = jnp.maximum(dense(h, "cw2", "cb2"), 0.0)
    # NOTE: no ReLU here — faithful to the PyTorch quirk (nn.ReLU passed as the
    # bias argument of the 3rd Linear, so it is never applied).
    feat = dense(h, "cw3", "cb3")

    # ---- state = cat(feat, pos); a = relu(l1(state)) as a split matmul ----
    a = jnp.maximum(
        jnp.dot(feat.astype(cd), P("w1a"), preferred_element_type=f32)
        + jnp.dot(pos.astype(cd), P("w1b"), preferred_element_type=f32)
        + P("b1").astype(f32), 0.0)

    # ---- a = relu(l2(a)); a = tanh(l3(a)); out = max_action * a ----
    a = jnp.maximum(dense(a, "w2", "b2"), 0.0)
    a = jnp.tanh(dense(a, "w3", "b3"))
    out_ref[...] = (max_action * a).astype(out_ref.dtype)   # lane-dense 128-wide store


# --------------------------------------------------------------------------
# Parameter packing: 13 tensors -> one (R, 128) slab + static layout table
# --------------------------------------------------------------------------
def pack_params(raw, dtype=jnp.bfloat16):
    """Zero-pad every weight to 128 output lanes (and to 128 K-rows when its
    input is a padded-width activation), stack them row-wise into one slab of
    `dtype` (bf16 by default: f32 accumulation happens in the kernel)."""

    def pad_n(w):                         # (k, n) -> (k, PAD)
        return jnp.pad(w, ((0, 0), (0, PAD - w.shape[1])))

    def pad_kn(w):                        # (k, n) -> (PAD, PAD)
        return jnp.pad(w, ((0, PAD - w.shape[0]), (0, PAD - w.shape[1])))

    entries = [
        ("cw1", pad_n(raw["cw1"])),       # input is raw lidar -> keep K
        ("cw2", pad_kn(raw["cw2"])),
        ("cw3", pad_kn(raw["cw3"])),
        ("w1a", pad_kn(raw["w1a"])),      # acts on padded feat
        ("w1b", pad_n(raw["w1b"])),       # acts on raw position -> keep K
        ("w2",  pad_kn(raw["w2"])),
        ("w3",  pad_kn(raw["w3"])),
        ("cb1", pad_n(raw["cb1"])),
        ("cb2", pad_n(raw["cb2"])),
        ("cb3", pad_n(raw["cb3"])),
        ("b1",  pad_n(raw["b1"])),
        ("b2",  pad_n(raw["b2"])),
        ("b3",  pad_n(raw["b3"])),
    ]
    layout, rows, off = {}, [], 0
    for name, arr in entries:
        k = arr.shape[0]
        k_alloc = _round_up(k, SEG_ALIGN)   # keep segments (16,128)-tile aligned
        layout[name] = (off, k)
        if k_alloc != k:
            arr = jnp.pad(arr, ((0, k_alloc - k), (0, 0)))
        rows.append(arr)
        off += k_alloc
    slab = jnp.concatenate(rows, axis=0).astype(dtype)       # (off, 128)
    return slab, layout


# --------------------------------------------------------------------------
# Wrapper
# --------------------------------------------------------------------------
def actor_forward(lidar_state, position_state, packed_params, layout,
                  max_action, action_dim, hidden_dim, lidar_feature_dim,
                  *, block_batch=2048, slice_output=True):
    batch, L = lidar_state.shape
    Ppos = position_state.shape[1]

    # Batch tile: multiple of 16, large by default (amortizes per-step
    # overhead), capped at ceil(batch/2) so the grid has >= 2 parallel steps
    # for v7x megacore whenever the batch is big enough to split.
    tb = _round_up(max(block_batch, 16), 16)
    tb = min(tb, max(_round_up(pl.cdiv(batch, 2), 16), 16))
    grid = (pl.cdiv(batch, tb),)   # ragged last block: tail rows are never written

    # Advisory cost estimate (logical flops, not padded).
    H, F, A = hidden_dim, lidar_feature_dim, action_dim
    flops = 2 * batch * (L * H + H * H + H * F + F * H + Ppos * H + H * H + H * A)
    transcendentals = batch * A
    bytes_accessed = (lidar_state.size * lidar_state.dtype.itemsize
                      + position_state.size * position_state.dtype.itemsize
                      + packed_params.size * packed_params.dtype.itemsize
                      + batch * PAD * 4)

    out = pl.pallas_call(
        functools.partial(_actor_kernel, float(max_action), layout),
        out_shape=jax.ShapeDtypeStruct((batch, PAD), jnp.float32),
        grid_spec=pltpu.PrefetchScalarGridSpec(
            num_scalar_prefetch=0,
            grid=grid,
            in_specs=[
                pl.BlockSpec((tb, L), lambda i: (i, 0)),
                pl.BlockSpec((tb, Ppos), lambda i: (i, 0)),
                # Param slab: full array, constant block index -> fetched once
                # and VMEM-resident across all grid steps.  (A Buffered(1)
                # pipeline_mode would save one shadow buffer (~0.2-0.4 MiB);
                # left at the default for maximum compiler compatibility.)
                pl.BlockSpec(packed_params.shape, lambda i: (0, 0)),
            ],
            out_specs=pl.BlockSpec((tb, PAD), lambda i: (i, 0)),
        ),
        compiler_params=pltpu.CompilerParams(
            dimension_semantics=("parallel",),
            vmem_limit_bytes=32 * 1024 * 1024),
        cost_estimate=pl.CostEstimate(
            flops=int(flops),
            transcendentals=int(transcendentals),
            bytes_accessed=int(bytes_accessed)),
    )(lidar_state, position_state, packed_params)

    if slice_output:
        # Drop-in semantics: (batch, action_dim).  For best end-to-end HBM
        # traffic pass slice_output=False and let the consumer fuse the slice
        # of the padded (batch, 128) block (only lanes [:action_dim] are valid).
        return out[:, :action_dim]
    return out


# --------------------------------------------------------------------------
# Parameter init (PyTorch nn.Linear default) + pure-JAX reference
# --------------------------------------------------------------------------
def _linear_params(key, fan_in, fan_out):
    kw, kb = jax.random.split(key)
    bound = 1.0 / jnp.sqrt(jnp.float32(fan_in))
    w = jax.random.uniform(kw, (fan_in, fan_out), jnp.float32, -bound, bound)
    b = jax.random.uniform(kb, (1, fan_out), jnp.float32, -bound, bound)
    return w, b


def make_params(key, lidar_state_dim, position_state_dim, lidar_feature_dim,
                action_dim, hidden_dim):
    keys = jax.random.split(key, 6)
    cw1, cb1 = _linear_params(keys[0], lidar_state_dim, hidden_dim)
    cw2, cb2 = _linear_params(keys[1], hidden_dim, hidden_dim)
    cw3, cb3 = _linear_params(keys[2], hidden_dim, lidar_feature_dim)
    w1, b1 = _linear_params(keys[3], lidar_feature_dim + position_state_dim,
                            hidden_dim)
    w2, b2 = _linear_params(keys[4], hidden_dim, hidden_dim)
    w3, b3 = _linear_params(keys[5], hidden_dim, action_dim)
    return {
        "cw1": cw1, "cb1": cb1, "cw2": cw2, "cb2": cb2, "cw3": cw3, "cb3": cb3,
        "w1a": w1[:lidar_feature_dim], "w1b": w1[lidar_feature_dim:], "b1": b1,
        "w2": w2, "b2": b2, "w3": w3, "b3": b3,
    }


def actor_reference(lidar_state, position_state, params, max_action):
    h = jnp.maximum(lidar_state @ params["cw1"] + params["cb1"], 0.0)
    h = jnp.maximum(h @ params["cw2"] + params["cb2"], 0.0)
    feat = h @ params["cw3"] + params["cb3"]            # no ReLU (ref quirk)
    w1 = jnp.concatenate([params["w1a"], params["w1b"]], axis=0)
    state = jnp.concatenate([feat, position_state], axis=-1)
    a = jnp.maximum(state @ w1 + params["b1"], 0.0)
    a = jnp.maximum(a @ params["w2"] + params["b2"], 0.0)
    a = jnp.tanh(a @ params["w3"] + params["b3"])
    return max_action * a


if __name__ == "__main__":
    lidar_state_dim = 32
    position_state_dim = 8
    lidar_feature_dim = 16
    action_dim = 8
    hidden_dim = 32
    max_action = 2.0

    root = jax.random.PRNGKey(0)
    k_params, k_lidar, k_pos = jax.random.split(root, 3)

    raw = make_params(k_params, lidar_state_dim, position_state_dim,
                      lidar_feature_dim, action_dim, hidden_dim)

    # ---- Case 1: f32 slab, ragged batch (10 rows -> one partial grid block). ----
    slab_f32, layout_f32 = pack_params(raw, dtype=jnp.float32)
    b1 = 10
    lidar1 = jax.random.normal(k_lidar, (b1, lidar_state_dim), jnp.float32)
    pos1 = jax.random.normal(k_pos, (b1, position_state_dim), jnp.float32)
    out1 = actor_forward(lidar1, pos1, slab_f32, layout_f32, max_action,
                         action_dim, hidden_dim, lidar_feature_dim)
    out1 = jax.block_until_ready(out1)
    ref1 = actor_reference(lidar1, pos1, raw, max_action)
    assert out1.shape == (b1, action_dim)
    assert jnp.allclose(out1, ref1, atol=1e-5, rtol=1e-5), "mismatch (f32 case)"

    # ---- Case 2: bf16 slab (f32 accumulate), multi-step grid (2 tiles of 32),
    #      padded output returned (consumer fuses the lane slice). ----
    slab_bf16, layout_bf16 = pack_params(raw, dtype=jnp.bfloat16)
    b2 = 64
    lidar2 = jax.random.normal(jax.random.PRNGKey(1), (b2, lidar_state_dim),
                               jnp.float32)
    pos2 = jax.random.normal(jax.random.PRNGKey(2), (b2, position_state_dim),
                             jnp.float32)
    out2 = actor_forward(lidar2, pos2, slab_bf16, layout_bf16, max_action,
                         action_dim, hidden_dim, lidar_feature_dim,
                         slice_output=False)
    out2 = jax.block_until_ready(out2)
    ref2 = actor_reference(lidar2, pos2, raw, max_action)
    assert out2.shape == (b2, PAD)
    assert jnp.allclose(out2[:, :action_dim], ref2, atol=5e-2, rtol=5e-2), \
        "mismatch (bf16 case)"

    print("KERNEL_OK")
</pallas_src>

<mosaic_0001>
module attributes {stable_mosaic.version = 11 : i64} {
  func.func @_actor_kernel(%arg0: i32, %arg1: memref<16x32xf32, #tpu.memory_space<vmem>>, %arg2: memref<16x8xf32, #tpu.memory_space<vmem>>, %arg3: memref<784x128xf32, #tpu.memory_space<vmem>>, %arg4: memref<16x128xf32, #tpu.memory_space<vmem>>) attributes {dimension_semantics = [#tpu.dimension_semantics<parallel>], iteration_bounds = array<i64: 1>, scalar_prefetch = 0 : i64, scratch_operands = 0 : i64, tpu.core_type = #tpu.core_type<tc>, window_params = [{transform_indices = @transform_0, window_bounds = array<i64: 16, 32>}, {transform_indices = @transform_1, window_bounds = array<i64: 16, 8>}, {pipeline_mode = #tpu.pipeline_mode<synchronous>, transform_indices = @transform_2, window_bounds = array<i64: 784, 128>}, {transform_indices = @transform_3, window_bounds = array<i64: 16, 128>}]} {
    %c0 = arith.constant 0 : index
    %c0_0 = arith.constant 0 : index
    %0 = vector.load %arg1[%c0, %c0_0] : memref<16x32xf32, #tpu.memory_space<vmem>>, vector<16x32xf32>
    %c0_1 = arith.constant 0 : index
    %c0_2 = arith.constant 0 : index
    %1 = vector.load %arg2[%c0_1, %c0_2] : memref<16x8xf32, #tpu.memory_space<vmem>>, vector<16x8xf32>
    %c0_3 = arith.constant 0 : index
    %c0_4 = arith.constant 0 : index
    %2 = vector.load %arg3[%c0_3, %c0_4] : memref<784x128xf32, #tpu.memory_space<vmem>>, vector<32x128xf32>
    %cst = arith.constant dense<0.000000e+00> : vector<16x128xf32>
    %3 = tpu.matmul %0, %2, %cst {dimension_numbers = #tpu.dot_dimension_numbers<[1], [0], [0], [1], [0, 0, 1, 1], [], []>} : vector<16x32xf32>, vector<32x128xf32>, vector<16x128xf32> -> vector<16x128xf32>
    %c688 = arith.constant 688 : index
    %c0_5 = arith.constant 0 : index
    %4 = vector.load %arg3[%c688, %c0_5] : memref<784x128xf32, #tpu.memory_space<vmem>>, vector<1x128xf32>
    %5 = vector.broadcast %4 : vector<1x128xf32> to vector<16x128xf32>
    %6 = arith.addf %3, %5 : vector<16x128xf32>
    %cst_6 = arith.constant 0.000000e+00 : f32
    %7 = vector.broadcast %cst_6 : f32 to vector<16x128xf32>
    %8 = arith.maximumf %6, %7 : vector<16x128xf32>
    %c32 = arith.constant 32 : index
    %c0_7 = arith.constant 0 : index
    %9 = vector.load %arg3[%c32, %c0_7] : memref<784x128xf32, #tpu.memory_space<vmem>>, vector<128x128xf32>
    %cst_8 = arith.constant dense<0.000000e+00> : vector<16x128xf32>
    %10 = tpu.matmul %8, %9, %cst_8 {dimension_numbers = #tpu.dot_dimension_numbers<[1], [0], [0], [1], [0, 0, 1, 1], [], []>} : vector<16x128xf32>, vector<128x128xf32>, vector<16x128xf32> -> vector<16x128xf32>
    %c704 = arith.constant 704 : index
    %c0_9 = arith.constant 0 : index
    %11 = vector.load %arg3[%c704, %c0_9] : memref<784x128xf32, #tpu.memory_space<vmem>>, vector<1x128xf32>
    %12 = vector.broadcast %11 : vector<1x128xf32> to vector<16x128xf32>
    %13 = arith.addf %10, %12 : vector<16x128xf32>
    %cst_10 = arith.constant 0.000000e+00 : f32
    %14 = vector.broadcast %cst_10 : f32 to vector<16x128xf32>
    %15 = arith.maximumf %13, %14 : vector<16x128xf32>
    %c160 = arith.constant 160 : index
    %c0_11 = arith.constant 0 : index
    %16 = vector.load %arg3[%c160, %c0_11] : memref<784x128xf32, #tpu.memory_space<vmem>>, vector<128x128xf32>
    %cst_12 = arith.constant dense<0.000000e+00> : vector<16x128xf32>
    %17 = tpu.matmul %15, %16, %cst_12 {dimension_numbers = #tpu.dot_dimension_numbers<[1], [0], [0], [1], [0, 0, 1, 1], [], []>} : vector<16x128xf32>, vector<128x128xf32>, vector<16x128xf32> -> vector<16x128xf32>
    %c720 = arith.constant 720 : index
    %c0_13 = arith.constant 0 : index
    %18 = vector.load %arg3[%c720, %c0_13] : memref<784x128xf32, #tpu.memory_space<vmem>>, vector<1x128xf32>
    %19 = vector.broadcast %18 : vector<1x128xf32> to vector<16x128xf32>
    %20 = arith.addf %17, %19 : vector<16x128xf32>
    %c288 = arith.constant 288 : index
    %c0_14 = arith.constant 0 : index
    %21 = vector.load %arg3[%c288, %c0_14] : memref<784x128xf32, #tpu.memory_space<vmem>>, vector<128x128xf32>
    %cst_15 = arith.constant dense<0.000000e+00> : vector<16x128xf32>
    %22 = tpu.matmul %20, %21, %cst_15 {dimension_numbers = #tpu.dot_dimension_numbers<[1], [0], [0], [1], [0, 0, 1, 1], [], []>} : vector<16x128xf32>, vector<128x128xf32>, vector<16x128xf32> -> vector<16x128xf32>
    %c416 = arith.constant 416 : index
    %c0_16 = arith.constant 0 : index
    %23 = vector.load %arg3[%c416, %c0_16] : memref<784x128xf32, #tpu.memory_space<vmem>>, vector<8x128xf32>
    %cst_17 = arith.constant dense<0.000000e+00> : vector<16x128xf32>
    %24 = tpu.matmul %1, %23, %cst_17 {dimension_numbers = #tpu.dot_dimension_numbers<[1], [0], [0], [1], [0, 0, 1, 1], [], []>} : vector<16x8xf32>, vector<8x128xf32>, vector<16x128xf32> -> vector<16x128xf32>
    %25 = arith.addf %22, %24 : vector<16x128xf32>
    %c736 = arith.constant 736 : index
    %c0_18 = arith.constant 0 : index
    %26 = vector.load %arg3[%c736, %c0_18] : memref<784x128xf32, #tpu.memory_space<vmem>>, vector<1x128xf32>
    %27 = vector.broadcast %26 : vector<1x128xf32> to vector<16x128xf32>
    %28 = arith.addf %25, %27 : vector<16x128xf32>
    %cst_19 = arith.constant 0.000000e+00 : f32
    %29 = vector.broadcast %cst_19 : f32 to vector<16x128xf32>
    %30 = arith.maximumf %28, %29 : vector<16x128xf32>
    %c432 = arith.constant 432 : index
    %c0_20 = arith.constant 0 : index
    %31 = vector.load %arg3[%c432, %c0_20] : memref<784x128xf32, #tpu.memory_space<vmem>>, vector<128x128xf32>
    %cst_21 = arith.constant dense<0.000000e+00> : vector<16x128xf32>
    %32 = tpu.matmul %30, %31, %cst_21 {dimension_numbers = #tpu.dot_dimension_numbers<[1], [0], [0], [1], [0, 0, 1, 1], [], []>} : vector<16x128xf32>, vector<128x128xf32>, vector<16x128xf32> -> vector<16x128xf32>
    %c752 = arith.constant 752 : index
    %c0_22 = arith.constant 0 : index
    %33 = vector.load %arg3[%c752, %c0_22] : memref<784x128xf32, #tpu.memory_space<vmem>>, vector<1x128xf32>
    %34 = vector.broadcast %33 : vector<1x128xf32> to vector<16x128xf32>
    %35 = arith.addf %32, %34 : vector<16x128xf32>
    %cst_23 = arith.constant 0.000000e+00 : f32
    %36 = vector.broadcast %cst_23 : f32 to vector<16x128xf32>
    %37 = arith.maximumf %35, %36 : vector<16x128xf32>
    %c560 = arith.constant 560 : index
    %c0_24 = arith.constant 0 : index
    %38 = vector.load %arg3[%c560, %c0_24] : memref<784x128xf32, #tpu.memory_space<vmem>>, vector<128x128xf32>
    %cst_25 = arith.constant dense<0.000000e+00> : vector<16x128xf32>
    %39 = tpu.matmul %37, %38, %cst_25 {dimension_numbers = #tpu.dot_dimension_numbers<[1], [0], [0], [1], [0, 0, 1, 1], [], []>} : vector<16x128xf32>, vector<128x128xf32>, vector<16x128xf32> -> vector<16x128xf32>
    %c768 = arith.constant 768 : index
    %c0_26 = arith.constant 0 : index
    %40 = vector.load %arg3[%c768, %c0_26] : memref<784x128xf32, #tpu.memory_space<vmem>>, vector<1x128xf32>
    %41 = vector.broadcast %40 : vector<1x128xf32> to vector<16x128xf32>
    %42 = arith.addf %39, %41 : vector<16x128xf32>
    %43 = math.tanh %42 : vector<16x128xf32>
    %cst_27 = arith.constant 2.000000e+00 : f32
    %44 = vector.broadcast %cst_27 : f32 to vector<16x128xf32>
    %45 = arith.mulf %44, %43 : vector<16x128xf32>
    %c0_28 = arith.constant 0 : index
    %c0_29 = arith.constant 0 : index
    %46 = vector.load %arg4[%c0_28, %c0_29] : memref<16x128xf32, #tpu.memory_space<vmem>>, vector<16x128xf32>
    tpu.vector_store %arg4[%c0_28, %c0_29], %45 {strides = array<i32>} : memref<16x128xf32, #tpu.memory_space<vmem>>, vector<16x128xf32>,
    return
  }
  func.func @transform_0(%arg0: i32) -> (i32, i32) {
    %c0_i32 = arith.constant 0 : i32
    %c0_i32_0 = arith.constant 0 : i32
    return %arg0, %c0_i32 : i32, i32
  }
  func.func @transform_1(%arg0: i32) -> (i32, i32) {
    %c0_i32 = arith.constant 0 : i32
    %c0_i32_0 = arith.constant 0 : i32
    return %arg0, %c0_i32 : i32, i32
  }
  func.func @transform_2(%arg0: i32) -> (i32, i32) {
    %c0_i32 = arith.constant 0 : i32
    %c0_i32_0 = arith.constant 0 : i32
    %c0_i32_1 = arith.constant 0 : i32
    return %c0_i32, %c0_i32_0 : i32, i32
  }
  func.func @transform_3(%arg0: i32) -> (i32, i32) {
    %c0_i32 = arith.constant 0 : i32
    %c0_i32_0 = arith.constant 0 : i32
    return %arg0, %c0_i32 : i32, i32
  }
}

</mosaic_0001>

<llo_original>
// kernel: tpu_custom_call.1
$region0: #{tpu_custom_call.1}
  #allocation0 [shape = 'u32[]', space=smem, size = 0x4, offset = 0x4, fixed_abs, tag = 'smem constant byte address 0x4 - core index']
  #allocation1 [shape = 'u32[144,128]{1,0:T(1,128)}', space=vmem, size = 0x12000, scoped, tag = 'internal scratch']
  %s0 = inlined_call_operand.vmem [shape: f32[10,32], index: 0, kind: input, shape index: {}]
  %s1 = inlined_call_operand.vmem [shape: f32[10,8], index: 1, kind: input, shape index: {}]
  %s2 = inlined_call_operand.hbm [shape: f32[784,128], index: 2, kind: input, shape index: {}]
  %s3 = inlined_call_operand.hbm [shape: f32[10,128], index: 3, kind: output, shape index: {}]
  %s4 = sld [smem:[#allocation0]]
  $region26: #{tpu_custom_call.1} parent=0
    _
  %s6 = ssub.s32 1, %s4
  %s7 = scalar_select 0, %s6, %s4
  $region1: #{tpu_custom_call.1} parent=0
    #allocation2 [shape = 'u8[401408]{0}', space=vmem, size = 0x62000, scoped, tag = 'input window, operand 2, single buffered']
    #allocation3 [shape = 's32[1]{0}', space=sflag, size = 0x4, scoped, tag = 'scoped memory for tpu_custom_call.1']
    #allocation4 [shape = 's32[1]{0}', space=sflag, size = 0x4, scoped, tag = 'scoped memory for tpu_custom_call.1']
    #allocation5 [shape = 'u8[8192]{0}', space=vmem, size = 0x2000, scoped, tag = 'output window, operand 0, single buffered']
    %8 = vsyncpa [#allocation3], 0
    %9 = vsyncpa [#allocation4], 0
    // Predicated region
    $region2: #{tpu_custom_call.1} parent=1 // pred_check
      _
    $region3: #{tpu_custom_call.1} parent=1 // pred_check_branch
      %11 = sbr.rel (0) target = $region5
    $region4: #{tpu_custom_call.1} parent=1 // pred_region
      _
    $region5: #{tpu_custom_call.1} parent=1 // pred_fallthru
      _
    // Predicated region
    $region6: #{tpu_custom_call.1} parent=1 // pred_check
      _
    $region7: #{tpu_custom_call.1} parent=1 // pred_check_branch
      %13 = sbr.rel (0) target = $region9
    $region8: #{tpu_custom_call.1} parent=1 // pred_region
      _
    $region9: #{tpu_custom_call.1} parent=1 // pred_fallthru
      _
    // Predicated region
    $region10: #{tpu_custom_call.1} parent=1 // pred_check
      _
    $region11: #{tpu_custom_call.1} parent=1 // pred_check_branch
      %15 = sbr.rel (0) target = $region13
    $region12: #{tpu_custom_call.1} parent=1 // pred_region
      %s17 = ssub.s32 12544, 12544
      %18 = vsyncadd [#allocation3], %s17
      %s19 = sshll.u32 [#allocation2], 4
      %s20 = int_to_ptr.vmem [resolvable:$true] %s19
      %25 = dma.hbm_to_vmem [thread:$0]  %s2, 12544, %s20, [#allocation3], 128, 128, 8
    $region13: #{tpu_custom_call.1} parent=1 // pred_fallthru
      _
    // Predicated region
    $region14: #{tpu_custom_call.1} parent=1 // pred_check
      _
    $region15: #{tpu_custom_call.1} parent=1 // pred_check_branch
      %27 = sbr.rel (0) target = $region17
    $region16: #{tpu_custom_call.1} parent=1 // pred_region
      %28 = dma.done [#allocation3], 12544
    $region17: #{tpu_custom_call.1} parent=1 // pred_fallthru
      _
    %v29 = vld [vmem:[%s0] sm:$0xff]
    %v30 = vld [vmem:[%s0 + $0x8] sm:$0xff]
    %v31 = vld [vmem:[%s1] sm:$0xff]
    %v32 = vld [vmem:[%s1 + $0x8] sm:$0xff]
    %v33 = vld [vmem:[#allocation2] sm:$0xff]
    %v34 = vld [vmem:[#allocation2 + $0x8] sm:$0xff]
    %v35 = vld [vmem:[#allocation2 + $0x10] sm:$0xff]
    %v36 = vld [vmem:[#allocation2 + $0x18] sm:$0xff]
    %v37 = vld [vmem:[#allocation2 + $0x2b0] sm:$0x1]
    %v38 = vlaneseq
    %v39 = vshrl.u32 %v38, 7
    %v40 = vsub.s32 0, %v39
    %v41 = vrot.slane %v37, %v40
    %vm42 = vcmask 261120
    %v44 = vsel %vm42, %v29, 0
    %v47 = vsel %vm42, %v30, 0
    %49 = vmatprep.subr.mxu0 0.0
    %50 = vmatpush1.msra.mxu0 %v33
    %51 = vmatprep.subr.mxu0 0.0
    %52 = vmatpush1.msra.mxu0 %v34
    %53 = vmatprep.subr.mxu0 0.0
    %54 = vmatpush1.msra.mxu0 %v35
    %55 = vmatprep.subr.mxu0 0.0
    %56 = vmatpush1.msra.mxu0 %v36
    %57 = vmatprep.subr.mxu0 0.0
    %58 = vmatpush1.msra.mxu0 0.0
    %59 = vmatprep.subr.mxu0 0.0
    %60 = vmatpush1.msra.mxu0 0.0
    %61 = vmatprep.subr.mxu0 0.0
    %62 = vmatpush1.msra.mxu0 0.0
    %63 = vmatprep.subr.mxu0 0.0
    %64 = vmatpush1.msra.mxu0 0.0
    %65 = vmatprep.subr.mxu0 0.0
    %66 = vmatpush1.msra.mxu0 0.0
    %67 = vmatprep.subr.mxu0 0.0
    %68 = vmatpush1.msra.mxu0 0.0
    %69 = vmatprep.subr.mxu0 0.0
    %70 = vmatpush1.msra.mxu0 0.0
    %71 = vmatprep.subr.mxu0 0.0
    %72 = vmatpush1.msra.mxu0 0.0
    %73 = vmatprep.subr.mxu0 0.0
    %74 = vmatpush1.msra.mxu0 0.0
    %75 = vmatprep.subr.mxu0 0.0
    %76 = vmatpush1.msra.mxu0 0.0
    %77 = vmatprep.subr.mxu0 0.0
    %78 = vmatpush1.msra.mxu0 0.0
    %79 = vmatprep.subr.mxu0 0.0
    %80 = vmatpush1.msra.mxu0 0.0
    %81 = vmatprep.subr.mxu0 0.0
    %82 = vmatpush1.msra.mxu0 0.0
    %83 = vmatprep.subr.mxu0 0.0
    %84 = vmatpush1.msra.mxu0 0.0
    %85 = vmatprep.subr.mxu0 0.0
    %86 = vmatpush1.msra.mxu0 0.0
    %87 = vmatprep.subr.mxu0 0.0
    %88 = vmatpush1.msra.mxu0 0.0
    %89 = vmatprep.subr.mxu0 0.0
    %90 = vmatpush1.msra.mxu0 0.0
    %91 = vmatprep.subr.mxu0 0.0
    %92 = vmatpush1.msra.mxu0 0.0
    %93 = vmatprep.subr.mxu0 0.0
    %94 = vmatpush1.msra.mxu0 0.0
    %95 = vmatprep.subr.mxu0 0.0
    %96 = vmatpush1.msra.mxu0 0.0
    %97 = vmatprep.subr.mxu0 0.0
    %98 = vmatpush1.msra.mxu0 0.0
    %99 = vmatprep.subr.mxu0 0.0
    %100 = vmatpush1.msra.mxu0 0.0
    %101 = vmatprep.subr.mxu0 0.0
    %102 = vmatpush1.msra.mxu0 0.0
    %103 = vmatprep.subr.mxu0 0.0
    %104 = vmatpush1.msra.mxu0 0.0
    %105 = vmatprep.subr.mxu0 0.0
    %106 = vmatpush1.msra.mxu0 0.0
    %107 = vmatprep.subr.mxu0 0.0
    %108 = vmatpush1.msra.mxu0 0.0
    %109 = vmatprep.subr.mxu0 0.0
    %110 = vmatpush1.msra.mxu0 0.0
    %111 = vmatprep.subr.mxu0 0.0
    %112 = vmatpush1.msra.mxu0 0.0
    %113 = vmatprep.mubr.f32.mxu0 0.0
    %114 = vmatmul.mubr.f32.gmra.mrb[0].mxu0 %v44
    %v115 = vpop.f32.mrb[0].mxu0
    %v116 = vadd.f32 %v41, %v115
    %v117 = vpop.f32.mrb[0].mxu0
    %118 = vmatprep.mubr.f32.mxu0 0.0
    %119 = vmatmul.mubr.f32.gmra.mrb[0].mxu0 %v47
    %v120 = vpop.f32.mrb[0].mxu0
    %v121 = vadd.f32 %v41, %v120
    %v122 = vpop.f32.mrb[0].mxu0
    %123 = vdwg.mxu0
    %v124 = vmax.f32 %v116, 0.0
    %v125 = vmax.f32 %v121, 0.0
    %v126 = vld [vmem:[#allocation2 + $0x20] sm:$0xff]
    %v127 = vld [vmem:[#allocation2 + $0x28] sm:$0xff]
    %v128 = vld [vmem:[#allocation2 + $0x30] sm:$0xff]
    %v129 = vld [vmem:[#allocation2 + $0x38] sm:$0xff]
    %v130 = vld [vmem:[#allocation2 + $0x40] sm:$0xff]
    %v131 = vld [vmem:[#allocation2 + $0x48] sm:$0xff]
    %v132 = vld [vmem:[#allocation2 + $0x50] sm:$0xff]
    %v133 = vld [vmem:[#allocation2 + $0x58] sm:$0xff]
    %v134 = vld [vmem:[#allocation2 + $0x60] sm:$0xff]
    %v135 = vld [vmem:[#allocation2 + $0x68] sm:$0xff]
    %v136 = vld [vmem:[#allocation2 + $0x70] sm:$0xff]
    %v137 = vld [vmem:[#allocation2 + $0x78] sm:$0xff]
    %v138 = vld [vmem:[#allocation2 + $0x80] sm:$0xff]
    %v139 = vld [vmem:[#allocation2 + $0x88] sm:$0xff]
    %v140 = vld [vmem:[#allocation2 + $0x90] sm:$0xff]
    %v141 = vld [vmem:[#allocation2 + $0x98] sm:$0xff]
    %v142 = vld [vmem:[#allocation2 + $0x2c0] sm:$0x1]
    %v143 = vlaneseq
    %v144 = vshrl.u32 %v143, 7
    %v145 = vsub.s32 0, %v144
    %v146 = vrot.slane %v142, %v145
    %147 = vmatprep.subr.mxu0 0.0
    %148 = vmatpush1.msra.mxu0 %v126
    %149 = vmatprep.subr.mxu0 0.0
    %150 = vmatpush1.msra.mxu0 %v127
    %151 = vmatprep.subr.mxu0 0.0
    %152 = vmatpush1.msra.mxu0 %v128
    %153 = vmatprep.subr.mxu0 0.0
    %154 = vmatpush1.msra.mxu0 %v129
    %155 = vmatprep.subr.mxu0 0.0
    %156 = vmatpush1.msra.mxu0 %v130
    %157 = vmatprep.subr.mxu0 0.0
    %158 = vmatpush1.msra.mxu0 %v131
    %159 = vmatprep.subr.mxu0 0.0
    %160 = vmatpush1.msra.mxu0 %v132
    %161 = vmatprep.subr.mxu0 0.0
    %162 = vmatpush1.msra.mxu0 %v133
    %163 = vmatprep.subr.mxu0 0.0
    %164 = vmatpush1.msra.mxu0 %v134
    %165 = vmatprep.subr.mxu0 0.0
    %166 = vmatpush1.msra.mxu0 %v135
    %167 = vmatprep.subr.mxu0 0.0
    %168 = vmatpush1.msra.mxu0 %v136
    %169 = vmatprep.subr.mxu0 0.0
    %170 = vmatpush1.msra.mxu0 %v137
    %171 = vmatprep.subr.mxu0 0.0
    %172 = vmatpush1.msra.mxu0 %v138
    %173 = vmatprep.subr.mxu0 0.0
    %174 = vmatpush1.msra.mxu0 %v139
    %175 = vmatprep.subr.mxu0 0.0
    %176 = vmatpush1.msra.mxu0 %v140
    %177 = vmatprep.subr.mxu0 0.0
    %178 = vmatpush1.msra.mxu0 %v141
    %179 = vmatprep.subr.mxu0 0.0
    %180 = vmatpush1.msra.mxu0 0.0
    %181 = vmatprep.subr.mxu0 0.0
    %182 = vmatpush1.msra.mxu0 0.0
    %183 = vmatprep.subr.mxu0 0.0
    %184 = vmatpush1.msra.mxu0 0.0
    %185 = vmatprep.subr.mxu0 0.0
    %186 = vmatpush1.msra.mxu0 0.0
    %187 = vmatprep.subr.mxu0 0.0
    %188 = vmatpush1.msra.mxu0 0.0
    %189 = vmatprep.subr.mxu0 0.0
    %190 = vmatpush1.msra.mxu0 0.0
    %191 = vmatprep.subr.mxu0 0.0
    %192 = vmatpush1.msra.mxu0 0.0
    %193 = vmatprep.subr.mxu0 0.0
    %194 = vmatpush1.msra.mxu0 0.0
    %195 = vmatprep.subr.mxu0 0.0
    %196 = vmatpush1.msra.mxu0 0.0
    %197 = vmatprep.subr.mxu0 0.0
    %198 = vmatpush1.msra.mxu0 0.0
    %199 = vmatprep.subr.mxu0 0.0
    %200 = vmatpush1.msra.mxu0 0.0
    %201 = vmatprep.subr.mxu0 0.0
    %202 = vmatpush1.msra.mxu0 0.0
    %203 = vmatprep.subr.mxu0 0.0
    %204 = vmatpush1.msra.mxu0 0.0
    %205 = vmatprep.subr.mxu0 0.0
    %206 = vmatpush1.msra.mxu0 0.0
    %207 = vmatprep.subr.mxu0 0.0
    %208 = vmatpush1.msra.mxu0 0.0
    %209 = vmatprep.subr.mxu0 0.0
    %210 = vmatpush1.msra.mxu0 0.0
    %211 = vmatprep.mubr.f32.mxu0 0.0
    %212 = vmatmul.mubr.f32.gmra.mrb[0].mxu0 %v124
    %v213 = vpop.f32.mrb[0].mxu0
    %v214 = vadd.f32 %v146, %v213
    %v215 = vpop.f32.mrb[0].mxu0
    %216 = vmatprep.mubr.f32.mxu0 0.0
    %217 = vmatmul.mubr.f32.gmra.mrb[0].mxu0 %v125
    %v218 = vpop.f32.mrb[0].mxu0
    %v219 = vadd.f32 %v146, %v218
    %v220 = vpop.f32.mrb[0].mxu0
    %221 = vdwg.mxu0
    %v222 = vmax.f32 %v214, 0.0
    %v223 = vmax.f32 %v219, 0.0
    %v224 = vld [vmem:[#allocation2 + $0xa0] sm:$0xff]
    %v225 = vld [vmem:[#allocation2 + $0xa8] sm:$0xff]
    %v226 = vld [vmem:[#allocation2 + $0xb0] sm:$0xff]
    %v227 = vld [vmem:[#allocation2 + $0xb8] sm:$0xff]
    %v228 = vld [vmem:[#allocation2 + $0xc0] sm:$0xff]
    %v229 = vld [vmem:[#allocation2 + $0xc8] sm:$0xff]
    %v230 = vld [vmem:[#allocation2 + $0xd0] sm:$0xff]
    %v231 = vld [vmem:[#allocation2 + $0xd8] sm:$0xff]
    %v232 = vld [vmem:[#allocation2 + $0xe0] sm:$0xff]
    %v233 = vld [vmem:[#allocation2 + $0xe8] sm:$0xff]
    %v234 = vld [vmem:[#allocation2 + $0xf0] sm:$0xff]
    %v235 = vld [vmem:[#allocation2 + $0xf8] sm:$0xff]
    %v236 = vld [vmem:[#allocation2 + $0x100] sm:$0xff]
    %v237 = vld [vmem:[#allocation2 + $0x108] sm:$0xff]
    %v238 = vld [vmem:[#allocation2 + $0x110] sm:$0xff]
    %v239 = vld [vmem:[#allocation2 + $0x118] sm:$0xff]
    %v240 = vld [vmem:[#allocation2 + $0x2d0] sm:$0x1]
    %v241 = vlaneseq
    %v242 = vshrl.u32 %v241, 7
    %v243 = vsub.s32 0, %v242
    %v244 = vrot.slane %v240, %v243
    %245 = vmatprep.subr.mxu0 0.0
    %246 = vmatpush1.msra.mxu0 %v224
    %247 = vmatprep.subr.mxu0 0.0
    %248 = vmatpush1.msra.mxu0 %v225
    %249 = vmatprep.subr.mxu0 0.0
    %250 = vmatpush1.msra.mxu0 %v226
    %251 = vmatprep.subr.mxu0 0.0
    %252 = vmatpush1.msra.mxu0 %v227
    %253 = vmatprep.subr.mxu0 0.0
    %254 = vmatpush1.msra.mxu0 %v228
    %255 = vmatprep.subr.mxu0 0.0
    %256 = vmatpush1.msra.mxu0 %v229
    %257 = vmatprep.subr.mxu0 0.0
    %258 = vmatpush1.msra.mxu0 %v230
    %259 = vmatprep.subr.mxu0 0.0
    %260 = vmatpush1.msra.mxu0 %v231
    %261 = vmatprep.subr.mxu0 0.0
    %262 = vmatpush1.msra.mxu0 %v232
    %263 = vmatprep.subr.mxu0 0.0
    %264 = vmatpush1.msra.mxu0 %v233
    %265 = vmatprep.subr.mxu0 0.0
    %266 = vmatpush1.msra.mxu0 %v234
    %267 = vmatprep.subr.mxu0 0.0
    %268 = vmatpush1.msra.mxu0 %v235
    %269 = vmatprep.subr.mxu0 0.0
    %270 = vmatpush1.msra.mxu0 %v236
    %271 = vmatprep.subr.mxu0 0.0
    %272 = vmatpush1.msra.mxu0 %v237
    %273 = vmatprep.subr.mxu0 0.0
    %274 = vmatpush1.msra.mxu0 %v238
    %275 = vmatprep.subr.mxu0 0.0
    %276 = vmatpush1.msra.mxu0 %v239
    %277 = vmatprep.subr.mxu0 0.0
    %278 = vmatpush1.msra.mxu0 0.0
    %279 = vmatprep.subr.mxu0 0.0
    %280 = vmatpush1.msra.mxu0 0.0
    %281 = vmatprep.subr.mxu0 0.0
    %282 = vmatpush1.msra.mxu0 0.0
    %283 = vmatprep.subr.mxu0 0.0
    %284 = vmatpush1.msra.mxu0 0.0
    %285 = vmatprep.subr.mxu0 0.0
    %286 = vmatpush1.msra.mxu0 0.0
    %287 = vmatprep.subr.mxu0 0.0
    %288 = vmatpush1.msra.mxu0 0.0
    %289 = vmatprep.subr.mxu0 0.0
    %290 = vmatpush1.msra.mxu0 0.0
    %291 = vmatprep.subr.mxu0 0.0
    %292 = vmatpush1.msra.mxu0 0.0
    %293 = vmatprep.subr.mxu0 0.0
    %294 = vmatpush1.msra.mxu0 0.0
    %295 = vmatprep.subr.mxu0 0.0
    %296 = vmatpush1.msra.mxu0 0.0
    %297 = vmatprep.subr.mxu0 0.0
    %298 = vmatpush1.msra.mxu0 0.0
    %299 = vmatprep.subr.mxu0 0.0
    %300 = vmatpush1.msra.mxu0 0.0
    %301 = vmatprep.subr.mxu0 0.0
    %302 = vmatpush1.msra.mxu0 0.0
    %303 = vmatprep.subr.mxu0 0.0
    %304 = vmatpush1.msra.mxu0 0.0
    %305 = vmatprep.subr.mxu0 0.0
    %306 = vmatpush1.msra.mxu0 0.0
    %307 = vmatprep.subr.mxu0 0.0
    %308 = vmatpush1.msra.mxu0 0.0
    %309 = vmatprep.mubr.f32.mxu0 0.0
    %310 = vmatmul.mubr.f32.gmra.mrb[0].mxu0 %v222
    %v311 = vpop.f32.mrb[0].mxu0
    %v312 = vadd.f32 %v244, %v311
    %v313 = vpop.f32.mrb[0].mxu0
    %314 = vmatprep.mubr.f32.mxu0 0.0
    %315 = vmatmul.mubr.f32.gmra.mrb[0].mxu0 %v223
    %v316 = vpop.f32.mrb[0].mxu0
    %v317 = vadd.f32 %v244, %v316
    %v318 = vpop.f32.mrb[0].mxu0
    %319 = vdwg.mxu0
    %v320 = vld [vmem:[#allocation2 + $0x120] sm:$0xff]
    %v321 = vld [vmem:[#allocation2 + $0x128] sm:$0xff]
    %v322 = vld [vmem:[#allocation2 + $0x130] sm:$0xff]
    %v323 = vld [vmem:[#allocation2 + $0x138] sm:$0xff]
    %v324 = vld [vmem:[#allocation2 + $0x140] sm:$0xff]
    %v325 = vld [vmem:[#allocation2 + $0x148] sm:$0xff]
    %v326 = vld [vmem:[#allocation2 + $0x150] sm:$0xff]
    %v327 = vld [vmem:[#allocation2 + $0x158] sm:$0xff]
    %v328 = vld [vmem:[#allocation2 + $0x160] sm:$0xff]
    %v329 = vld [vmem:[#allocation2 + $0x168] sm:$0xff]
    %v330 = vld [vmem:[#allocation2 + $0x170] sm:$0xff]
    %v331 = vld [vmem:[#allocation2 + $0x178] sm:$0xff]
    %v332 = vld [vmem:[#allocation2 + $0x180] sm:$0xff]
    %v333 = vld [vmem:[#allocation2 + $0x188] sm:$0xff]
    %v334 = vld [vmem:[#allocation2 + $0x190] sm:$0xff]
    %v335 = vld [vmem:[#allocation2 + $0x198] sm:$0xff]
    %v336 = vld [vmem:[#allocation2 + $0x1a0] sm:$0xff]
    %vm337 = vcmask 64512
    %v339 = vsel %vm337, %v31, 0
    %v342 = vsel %vm337, %v32, 0
    %344 = vmatprep.subr.mxu0 0.0
    %345 = vmatpush1.msra.mxu0 %v336
    %346 = vmatprep.subr.mxu0 0.0
    %347 = vmatpush1.msra.mxu0 0.0
    %348 = vmatprep.subr.mxu0 0.0
    %349 = vmatpush1.msra.mxu0 0.0
    %350 = vmatprep.subr.mxu0 0.0
    %351 = vmatpush1.msra.mxu0 0.0
    %352 = vmatprep.subr.mxu0 0.0
    %353 = vmatpush1.msra.mxu0 0.0
    %354 = vmatprep.subr.mxu0 0.0
    %355 = vmatpush1.msra.mxu0 0.0
    %356 = vmatprep.subr.mxu0 0.0
    %357 = vmatpush1.msra.mxu0 0.0
    %358 = vmatprep.subr.mxu0 0.0
    %359 = vmatpush1.msra.mxu0 0.0
    %360 = vmatprep.subr.mxu0 0.0
    %361 = vmatpush1.msra.mxu0 0.0
    %362 = vmatprep.subr.mxu0 0.0
    %363 = vmatpush1.msra.mxu0 0.0
    %364 = vmatprep.subr.mxu0 0.0
    %365 = vmatpush1.msra.mxu0 0.0
    %366 = vmatprep.subr.mxu0 0.0
    %367 = vmatpush1.msra.mxu0 0.0
    %368 = vmatprep.subr.mxu0 0.0
    %369 = vmatpush1.msra.mxu0 0.0
    %370 = vmatprep.subr.mxu0 0.0
    %371 = vmatpush1.msra.mxu0 0.0
    %372 = vmatprep.subr.mxu0 0.0
    %373 = vmatpush1.msra.mxu0 0.0
    %374 = vmatprep.subr.mxu0 0.0
    %375 = vmatpush1.msra.mxu0 0.0
    %376 = vmatprep.subr.mxu0 0.0
    %377 = vmatpush1.msra.mxu0 0.0
    %378 = vmatprep.subr.mxu0 0.0
    %379 = vmatpush1.msra.mxu0 0.0
    %380 = vmatprep.subr.mxu0 0.0
    %381 = vmatpush1.msra.mxu0 0.0
    %382 = vmatprep.subr.mxu0 0.0
    %383 = vmatpush1.msra.mxu0 0.0
    %384 = vmatprep.subr.mxu0 0.0
    %385 = vmatpush1.msra.mxu0 0.0
    %386 = vmatprep.subr.mxu0 0.0
    %387 = vmatpush1.msra.mxu0 0.0
    %388 = vmatprep.subr.mxu0 0.0
    %389 = vmatpush1.msra.mxu0 0.0
    %390 = vmatprep.subr.mxu0 0.0
    %391 = vmatpush1.msra.mxu0 0.0
    %392 = vmatprep.subr.mxu0 0.0
    %393 = vmatpush1.msra.mxu0 0.0
    %394 = vmatprep.subr.mxu0 0.0
    %395 = vmatpush1.msra.mxu0 0.0
    %396 = vmatprep.subr.mxu0 0.0
    %397 = vmatpush1.msra.mxu0 0.0
    %398 = vmatprep.subr.mxu0 0.0
    %399 = vmatpush1.msra.mxu0 0.0
    %400 = vmatprep.subr.mxu0 0.0
    %401 = vmatpush1.msra.mxu0 0.0
    %402 = vmatprep.subr.mxu0 0.0
    %403 = vmatpush1.msra.mxu0 0.0
    %404 = vmatprep.subr.mxu0 0.0
    %405 = vmatpush1.msra.mxu0 0.0
    %406 = vmatprep.subr.mxu0 0.0
    %407 = vmatpush1.msra.mxu0 0.0
    %408 = vmatprep.mubr.f32.mxu0 0.0
    %409 = vmatmul.mubr.f32.gmra.mrb[0].mxu0 %v339
    %v410 = vpop.f32.mrb[0].mxu0
    %v411 = vadd.f32 0.0, %v410
    %v412 = vpop.f32.mrb[0].mxu0
    %413 = vmatprep.mubr.f32.mxu0 0.0
    %414 = vmatmul.mubr.f32.gmra.mrb[0].mxu0 %v342
    %v415 = vpop.f32.mrb[0].mxu0
    %v416 = vadd.f32 0.0, %v415
    %v417 = vpop.f32.mrb[0].mxu0
    %418 = vdwg.mxu0
    %419 = vmatprep.subr.mxu0 0.0
    %420 = vmatpush1.msra.mxu0 %v320
    %421 = vmatprep.subr.mxu0 0.0
    %422 = vmatpush1.msra.mxu0 %v321
    %423 = vmatprep.subr.mxu0 0.0
    %424 = vmatpush1.msra.mxu0 %v322
    %425 = vmatprep.subr.mxu0 0.0
    %426 = vmatpush1.msra.mxu0 %v323
    %427 = vmatprep.subr.mxu0 0.0
    %428 = vmatpush1.msra.mxu0 %v324
    %429 = vmatprep.subr.mxu0 0.0
    %430 = vmatpush1.msra.mxu0 %v325
    %431 = vmatprep.subr.mxu0 0.0
    %432 = vmatpush1.msra.mxu0 %v326
    %433 = vmatprep.subr.mxu0 0.0
    %434 = vmatpush1.msra.mxu0 %v327
    %435 = vmatprep.subr.mxu0 0.0
    %436 = vmatpush1.msra.mxu0 %v328
    %437 = vmatprep.subr.mxu0 0.0
    %438 = vmatpush1.msra.mxu0 %v329
    %439 = vmatprep.subr.mxu0 0.0
    %440 = vmatpush1.msra.mxu0 %v330
    %441 = vmatprep.subr.mxu0 0.0
    %442 = vmatpush1.msra.mxu0 %v331
    %443 = vmatprep.subr.mxu0 0.0
    %444 = vmatpush1.msra.mxu0 %v332
    %445 = vmatprep.subr.mxu0 0.0
    %446 = vmatpush1.msra.mxu0 %v333
    %447 = vmatprep.subr.mxu0 0.0
    %448 = vmatpush1.msra.mxu0 %v334
    %449 = vmatprep.subr.mxu0 0.0
    %450 = vmatpush1.msra.mxu0 %v335
    %451 = vmatprep.subr.mxu0 0.0
    %452 = vmatpush1.msra.mxu0 0.0
    %453 = vmatprep.subr.mxu0 0.0
    %454 = vmatpush1.msra.mxu0 0.0
    %455 = vmatprep.subr.mxu0 0.0
    %456 = vmatpush1.msra.mxu0 0.0
    %457 = vmatprep.subr.mxu0 0.0
    %458 = vmatpush1.msra.mxu0 0.0
    %459 = vmatprep.subr.mxu0 0.0
    %460 = vmatpush1.msra.mxu0 0.0
    %461 = vmatprep.subr.mxu0 0.0
    %462 = vmatpush1.msra.mxu0 0.0
    %463 = vmatprep.subr.mxu0 0.0
    %464 = vmatpush1.msra.mxu0 0.0
    %465 = vmatprep.subr.mxu0 0.0
    %466 = vmatpush1.msra.mxu0 0.0
    %467 = vmatprep.subr.mxu0 0.0
    %468 = vmatpush1.msra.mxu0 0.0
    %469 = vmatprep.subr.mxu0 0.0
    %470 = vmatpush1.msra.mxu0 0.0
    %471 = vmatprep.subr.mxu0 0.0
    %472 = vmatpush1.msra.mxu0 0.0
    %473 = vmatprep.subr.mxu0 0.0
    %474 = vmatpush1.msra.mxu0 0.0
    %475 = vmatprep.subr.mxu0 0.0
    %476 = vmatpush1.msra.mxu0 0.0
    %477 = vmatprep.subr.mxu0 0.0
    %478 = vmatpush1.msra.mxu0 0.0
    %479 = vmatprep.subr.mxu0 0.0
    %480 = vmatpush1.msra.mxu0 0.0
    %481 = vmatprep.subr.mxu0 0.0
    %482 = vmatpush1.msra.mxu0 0.0
    %483 = vmatprep.mubr.f32.mxu0 0.0
    %484 = vmatmul.mubr.f32.gmra.mrb[0].mxu0 %v312
    %v485 = vpop.f32.mrb[0].mxu0
    %v486 = vadd.f32 %v411, %v485
    %v487 = vpop.f32.mrb[0].mxu0
    %488 = vmatprep.mubr.f32.mxu0 0.0
    %489 = vmatmul.mubr.f32.gmra.mrb[0].mxu0 %v317
    %v490 = vpop.f32.mrb[0].mxu0
    %v491 = vadd.f32 %v416, %v490
    %v492 = vpop.f32.mrb[0].mxu0
    %493 = vdwg.mxu0
    %v494 = vld [vmem:[#allocation2 + $0x2e0] sm:$0x1]
    %v495 = vlaneseq
    %v496 = vshrl.u32 %v495, 7
    %v497 = vsub.s32 0, %v496
    %v498 = vrot.slane %v494, %v497
    %v499 = vadd.f32 %v486, %v498
    %v500 = vadd.f32 %v491, %v498
    %v501 = vmax.f32 %v499, 0.0
    %v502 = vmax.f32 %v500, 0.0
    %v503 = vld [vmem:[#allocation2 + $0x1b0] sm:$0xff]
    %v504 = vld [vmem:[#allocation2 + $0x1b8] sm:$0xff]
    %v505 = vld [vmem:[#allocation2 + $0x1c0] sm:$0xff]
    %v506 = vld [vmem:[#allocation2 + $0x1c8] sm:$0xff]
    %v507 = vld [vmem:[#allocation2 + $0x1d0] sm:$0xff]
    %v508 = vld [vmem:[#allocation2 + $0x1d8] sm:$0xff]
    %v509 = vld [vmem:[#allocation2 + $0x1e0] sm:$0xff]
    %v510 = vld [vmem:[#allocation2 + $0x1e8] sm:$0xff]
    %v511 = vld [vmem:[#allocation2 + $0x1f0] sm:$0xff]
    %v512 = vld [vmem:[#allocation2 + $0x1f8] sm:$0xff]
    %v513 = vld [vmem:[#allocation2 + $0x200] sm:$0xff]
    %v514 = vld [vmem:[#allocation2 + $0x208] sm:$0xff]
    %v515 = vld [vmem:[#allocation2 + $0x210] sm:$0xff]
    %v516 = vld [vmem:[#allocation2 + $0x218] sm:$0xff]
    %v517 = vld [vmem:[#allocation2 + $0x220] sm:$0xff]
    %v518 = vld [vmem:[#allocation2 + $0x228] sm:$0xff]
    %v519 = vld [vmem:[#allocation2 + $0x2f0] sm:$0x1]
    %v520 = vlaneseq
    %v521 = vshrl.u32 %v520, 7
    %v522 = vsub.s32 0, %v521
    %v523 = vrot.slane %v519, %v522
    %524 = vmatprep.subr.mxu0 0.0
    %525 = vmatpush1.msra.mxu0 %v503
    %526 = vmatprep.subr.mxu0 0.0
    %527 = vmatpush1.msra.mxu0 %v504
    %528 = vmatprep.subr.mxu0 0.0
    %529 = vmatpush1.msra.mxu0 %v505
    %530 = vmatprep.subr.mxu0 0.0
    %531 = vmatpush1.msra.mxu0 %v506
    %532 = vmatprep.subr.mxu0 0.0
    %533 = vmatpush1.msra.mxu0 %v507
    %534 = vmatprep.subr.mxu0 0.0
    %535 = vmatpush1.msra.mxu0 %v508
    %536 = vmatprep.subr.mxu0 0.0
    %537 = vmatpush1.msra.mxu0 %v509
    %538 = vmatprep.subr.mxu0 0.0
    %539 = vmatpush1.msra.mxu0 %v510
    %540 = vmatprep.subr.mxu0 0.0
    %541 = vmatpush1.msra.mxu0 %v511
    %542 = vmatprep.subr.mxu0 0.0
    %543 = vmatpush1.msra.mxu0 %v512
    %544 = vmatprep.subr.mxu0 0.0
    %545 = vmatpush1.msra.mxu0 %v513
    %546 = vmatprep.subr.mxu0 0.0
    %547 = vmatpush1.msra.mxu0 %v514
    %548 = vmatprep.subr.mxu0 0.0
    %549 = vmatpush1.msra.mxu0 %v515
    %550 = vmatprep.subr.mxu0 0.0
    %551 = vmatpush1.msra.mxu0 %v516
    %552 = vmatprep.subr.mxu0 0.0
    %553 = vmatpush1.msra.mxu0 %v517
    %554 = vmatprep.subr.mxu0 0.0
    %555 = vmatpush1.msra.mxu0 %v518
    %556 = vmatprep.subr.mxu0 0.0
    %557 = vmatpush1.msra.mxu0 0.0
    %558 = vmatprep.subr.mxu0 0.0
    %559 = vmatpush1.msra.mxu0 0.0
    %560 = vmatprep.subr.mxu0 0.0
    %561 = vmatpush1.msra.mxu0 0.0
    %562 = vmatprep.subr.mxu0 0.0
    %563 = vmatpush1.msra.mxu0 0.0
    %564 = vmatprep.subr.mxu0 0.0
    %565 = vmatpush1.msra.mxu0 0.0
    %566 = vmatprep.subr.mxu0 0.0
    %567 = vmatpush1.msra.mxu0 0.0
    %568 = vmatprep.subr.mxu0 0.0
    %569 = vmatpush1.msra.mxu0 0.0
    %570 = vmatprep.subr.mxu0 0.0
    %571 = vmatpush1.msra.mxu0 0.0
    %572 = vmatprep.subr.mxu0 0.0
    %573 = vmatpush1.msra.mxu0 0.0
    %574 = vmatprep.subr.mxu0 0.0
    %575 = vmatpush1.msra.mxu0 0.0
    %576 = vmatprep.subr.mxu0 0.0
    %577 = vmatpush1.msra.mxu0 0.0
    %578 = vmatprep.subr.mxu0 0.0
    %579 = vmatpush1.msra.mxu0 0.0
    %580 = vmatprep.subr.mxu0 0.0
    %581 = vmatpush1.msra.mxu0 0.0
    %582 = vmatprep.subr.mxu0 0.0
    %583 = vmatpush1.msra.mxu0 0.0
    %584 = vmatprep.subr.mxu0 0.0
    %585 = vmatpush1.msra.mxu0 0.0
    %586 = vmatprep.subr.mxu0 0.0
    %587 = vmatpush1.msra.mxu0 0.0
    %588 = vmatprep.mubr.f32.mxu0 0.0
    %589 = vmatmul.mubr.f32.gmra.mrb[0].mxu0 %v501
    %v590 = vpop.f32.mrb[0].mxu0
    %v591 = vadd.f32 %v523, %v590
    %v592 = vpop.f32.mrb[0].mxu0
    %593 = vmatprep.mubr.f32.mxu0 0.0
    %594 = vmatmul.mubr.f32.gmra.mrb[0].mxu0 %v502
    %v595 = vpop.f32.mrb[0].mxu0
    %v596 = vadd.f32 %v523, %v595
    %v597 = vpop.f32.mrb[0].mxu0
    %598 = vdwg.mxu0
    %v599 = vmax.f32 %v591, 0.0
    %v600 = vmax.f32 %v596, 0.0
    %v601 = vld [vmem:[#allocation2 + $0x230] sm:$0xff]
    %v602 = vld [vmem:[#allocation2 + $0x238] sm:$0xff]
    %v603 = vld [vmem:[#allocation2 + $0x240] sm:$0xff]
    %v604 = vld [vmem:[#allocation2 + $0x248] sm:$0xff]
    %v605 = vld [vmem:[#allocation2 + $0x250] sm:$0xff]
    %v606 = vld [vmem:[#allocation2 + $0x258] sm:$0xff]
    %v607 = vld [vmem:[#allocation2 + $0x260] sm:$0xff]
    %v608 = vld [vmem:[#allocation2 + $0x268] sm:$0xff]
    %v609 = vld [vmem:[#allocation2 + $0x270] sm:$0xff]
    %v610 = vld [vmem:[#allocation2 + $0x278] sm:$0xff]
    %v611 = vld [vmem:[#allocation2 + $0x280] sm:$0xff]
    %v612 = vld [vmem:[#allocation2 + $0x288] sm:$0xff]
    %v613 = vld [vmem:[#allocation2 + $0x290] sm:$0xff]
    %v614 = vld [vmem:[#allocation2 + $0x298] sm:$0xff]
    %v615 = vld [vmem:[#allocation2 + $0x2a0] sm:$0xff]
    %v616 = vld [vmem:[#allocation2 + $0x2a8] sm:$0xff]
    %v617 = vld [vmem:[#allocation2 + $0x300] sm:$0x1]
    %v618 = vlaneseq
    %v619 = vshrl.u32 %v618, 7
    %v620 = vsub.s32 0, %v619
    %v621 = vrot.slane %v617, %v620
    %622 = vmatprep.subr.mxu0 0.0
    %623 = vmatpush1.msra.mxu0 %v601
    %624 = vmatprep.subr.mxu0 0.0
    %625 = vmatpush1.msra.mxu0 %v602
    %626 = vmatprep.subr.mxu0 0.0
    %627 = vmatpush1.msra.mxu0 %v603
    %628 = vmatprep.subr.mxu0 0.0
    %629 = vmatpush1.msra.mxu0 %v604
    %630 = vmatprep.subr.mxu0 0.0
    %631 = vmatpush1.msra.mxu0 %v605
    %632 = vmatprep.subr.mxu0 0.0
    %633 = vmatpush1.msra.mxu0 %v606
    %634 = vmatprep.subr.mxu0 0.0
    %635 = vmatpush1.msra.mxu0 %v607
    %636 = vmatprep.subr.mxu0 0.0
    %637 = vmatpush1.msra.mxu0 %v608
    %638 = vmatprep.subr.mxu0 0.0
    %639 = vmatpush1.msra.mxu0 %v609
    %640 = vmatprep.subr.mxu0 0.0
    %641 = vmatpush1.msra.mxu0 %v610
    %642 = vmatprep.subr.mxu0 0.0
    %643 = vmatpush1.msra.mxu0 %v611
    %644 = vmatprep.subr.mxu0 0.0
    %645 = vmatpush1.msra.mxu0 %v612
    %646 = vmatprep.subr.mxu0 0.0
    %647 = vmatpush1.msra.mxu0 %v613
    %648 = vmatprep.subr.mxu0 0.0
    %649 = vmatpush1.msra.mxu0 %v614
    %650 = vmatprep.subr.mxu0 0.0
    %651 = vmatpush1.msra.mxu0 %v615
    %652 = vmatprep.subr.mxu0 0.0
    %653 = vmatpush1.msra.mxu0 %v616
    %654 = vmatprep.subr.mxu0 0.0
    %655 = vmatpush1.msra.mxu0 0.0
    %656 = vmatprep.subr.mxu0 0.0
    %657 = vmatpush1.msra.mxu0 0.0
    %658 = vmatprep.subr.mxu0 0.0
    %659 = vmatpush1.msra.mxu0 0.0
    %660 = vmatprep.subr.mxu0 0.0
    %661 = vmatpush1.msra.mxu0 0.0
    %662 = vmatprep.subr.mxu0 0.0
    %663 = vmatpush1.msra.mxu0 0.0
    %664 = vmatprep.subr.mxu0 0.0
    %665 = vmatpush1.msra.mxu0 0.0
    %666 = vmatprep.subr.mxu0 0.0
    %667 = vmatpush1.msra.mxu0 0.0
    %668 = vmatprep.subr.mxu0 0.0
    %669 = vmatpush1.msra.mxu0 0.0
    %670 = vmatprep.subr.mxu0 0.0
    %671 = vmatpush1.msra.mxu0 0.0
    %672 = vmatprep.subr.mxu0 0.0
    %673 = vmatpush1.msra.mxu0 0.0
    %674 = vmatprep.subr.mxu0 0.0
    %675 = vmatpush1.msra.mxu0 0.0
    %676 = vmatprep.subr.mxu0 0.0
    %677 = vmatpush1.msra.mxu0 0.0
    %678 = vmatprep.subr.mxu0 0.0
    %679 = vmatpush1.msra.mxu0 0.0
    %680 = vmatprep.subr.mxu0 0.0
    %681 = vmatpush1.msra.mxu0 0.0
    %682 = vmatprep.subr.mxu0 0.0
    %683 = vmatpush1.msra.mxu0 0.0
    %684 = vmatprep.subr.mxu0 0.0
    %685 = vmatpush1.msra.mxu0 0.0
    %686 = vmatprep.mubr.f32.mxu0 0.0
    %687 = vmatmul.mubr.f32.gmra.mrb[0].mxu0 %v599
    %v688 = vpop.f32.mrb[0].mxu0
    %v689 = vadd.f32 %v621, %v688
    %v690 = vpop.f32.mrb[0].mxu0
    %691 = vmatprep.mubr.f32.mxu0 0.0
    %692 = vmatmul.mubr.f32.gmra.mrb[0].mxu0 %v600
    %v693 = vpop.f32.mrb[0].mxu0
    %v694 = vadd.f32 %v621, %v693
    %v695 = vpop.f32.mrb[0].mxu0
    %696 = vdwg.mxu0
    %v697 = vtanh.pop %v689
    %v698 = vtanh.pop %v694
    %v699 = vmul.f32 %v697, 2.0
    %v700 = vmul.f32 %v698, 2.0
    %701 = vst [vmem:[#allocation5] sm:$0xff] %v699
    %702 = vst [vmem:[#allocation5 + $0x8] sm:$0xff] %v700
    // Predicated region
    $region18: #{tpu_custom_call.1} parent=1 // pred_check
      _
    $region19: #{tpu_custom_call.1} parent=1 // pred_check_branch
      %704 = sbr.rel (0) target = $region21
    $region20: #{tpu_custom_call.1} parent=1 // pred_region
      %s706 = ssub.s32 256, 256
      %707 = vsyncadd [#allocation4], %s706
      %s708 = sshll.u32 [#allocation5], 4
      %s709 = int_to_ptr.vmem [resolvable:$true] %s708
      %714 = dma.vmem_to_hbm [thread:$0]  %s709, 256, %s3, [#allocation4], 128, 128, 8
    $region21: #{tpu_custom_call.1} parent=1 // pred_fallthru
      _
    // Predicated region
    $region22: #{tpu_custom_call.1} parent=1 // pred_check
      _
    $region23: #{tpu_custom_call.1} parent=1 // pred_check_branch
      %716 = sbr.rel (0) target = $region25
    $region24: #{tpu_custom_call.1} parent=1 // pred_region
      %717 = dma.done [#allocation4], 256
    $region25: #{tpu_custom_call.1} parent=1 // pred_fallthru
      _
    %718 = vsyncpa [#allocation3], 1
    %719 = vsyncpa [#allocation4], 1

</llo_original>
